<compile_context>
chip_gen: v5e
topology: v5e:2x2
jax: 0.10.0
libtpu: 0.0.40
codegen_flags: <defaults>
</compile_context>

<pallas_src>
import math

import jax
import jax.numpy as jnp
from jax.experimental import pallas as pl
from jax.experimental.pallas import tpu as pltpu


def _round_up(x, m):
    return ((x + m - 1) // m) * m


def joint_gru_kernel(joint_h_ref, mgn_ref, w_ref, b_ref, out_ref):
    """One batch tile: fused-gate matmul on the MXU, gates + blend on VPU/EUP."""
    H = out_ref.shape[-1]

    # bf16 operands (no-op if already bf16), f32 accumulation on the MXU.
    mgn_bf16 = mgn_ref[...].astype(jnp.bfloat16)                  # (TB, K)
    lin = jnp.dot(mgn_bf16, w_ref[...],                            # (TB, 2H) f32
                  preferred_element_type=jnp.float32)
    lin = lin + b_ref[...]                                         # (1, 2H) broadcast

    # Split the fused result into the two gates; elementwise math in f32.
    joint_z = jax.nn.sigmoid(lin[:, :H])
    joint_h_tilde = jnp.tanh(lin[:, H:])

    joint_h = joint_h_ref[...].astype(jnp.float32)                 # (TB, H)
    out_ref[...] = (joint_h_tilde
                    + joint_z * (joint_h - joint_h_tilde)).astype(out_ref.dtype)


def fuse_joint_gru_params(W_z, W_h, b_z, b_h, *, weight_dtype=jnp.bfloat16):
    """Fuse gate weights/biases ONCE (call at parameter init, not per timestep)."""
    W_cat = jnp.concatenate([W_z, W_h], axis=1).astype(weight_dtype)      # (K, 2H)
    b_cat = jnp.concatenate([b_z, b_h], axis=0).reshape(1, -1)
    b_cat = b_cat.astype(jnp.float32)                                     # (1, 2H)
    return W_cat, b_cat


def joint_gru_cell(joint_h, mgn_h_tilde, W_cat, b_cat, *, block_b=512):
    """Pallas wrapper.

    joint_h: (B, H); mgn_h_tilde: (B, K); W_cat: (K, 2H) (bf16); b_cat: (1, 2H).
    (The module implicitly requires K == input_size * n_dim == joint_hidden_size.)
    Activation/output dtypes are passed through (feed bf16 to stream bf16).
    """
    B, H = joint_h.shape
    K = mgn_h_tilde.shape[1]
    assert W_cat.shape == (K, 2 * H)
    assert b_cat.shape == (1, 2 * H)

    # Batch tile: multiple of 8 sublanes.  No padding of the input — the
    # ragged last block is clipped by Pallas (padded reads, masked stores).
    TB = min(block_b, _round_up(B, 8))
    if B > 8:
        # Keep >= 2 grid steps so v7x can shard the batch axis across its 2 TCs.
        TB = min(TB, _round_up(pl.cdiv(B, 2), 8))
    TB = max(8, _round_up(TB, 8))
    grid = (pl.cdiv(B, TB),)

    out_dtype = joint_h.dtype
    h_bytes = jnp.dtype(joint_h.dtype).itemsize
    m_bytes = jnp.dtype(mgn_h_tilde.dtype).itemsize
    o_bytes = jnp.dtype(out_dtype).itemsize
    w_bytes = jnp.dtype(W_cat.dtype).itemsize
    bb_bytes = jnp.dtype(b_cat.dtype).itemsize

    # Scoped-VMEM budget: double-buffered activation tiles + (conservatively
    # double-buffered) resident weight/bias, with headroom.  Covers v5e's
    # 16 MiB default; capped at 64 MiB so it is also valid on v7x.
    vmem_needed = (2 * TB * (K * m_bytes + H * (h_bytes + o_bytes))
                   + 2 * W_cat.size * w_bytes
                   + 2 * b_cat.size * bb_bytes)
    vmem_limit = int(min(max(int(vmem_needed * 1.5) + (2 << 20), 32 << 20),
                         64 << 20))

    cost = pl.CostEstimate(
        flops=2 * B * K * (2 * H),
        transcendentals=2 * B * H,
        bytes_accessed=(B * K * m_bytes + B * H * (h_bytes + o_bytes)
                        + W_cat.size * w_bytes + b_cat.size * bb_bytes),
    )

    return pl.pallas_call(
        joint_gru_kernel,
        out_shape=jax.ShapeDtypeStruct((B, H), out_dtype),
        grid=grid,
        in_specs=[
            pl.BlockSpec((TB, H), lambda i: (i, 0)),        # joint_h (streamed)
            pl.BlockSpec((TB, K), lambda i: (i, 0)),        # mgn_h_tilde (streamed)
            # Resident operands (constant index_map).  On v7x with large H,
            # consider pipeline_mode=pl.Buffered(1) here or a K/N grid axis
            # with an f32 accumulator instead of full residency.
            pl.BlockSpec((K, 2 * H), lambda i: (0, 0)),     # fused W (resident)
            pl.BlockSpec((1, 2 * H), lambda i: (0, 0)),     # fused b (resident)
        ],
        out_specs=pl.BlockSpec((TB, H), lambda i: (i, 0)),
        compiler_params=pltpu.CompilerParams(
            dimension_semantics=("parallel",),
            vmem_limit_bytes=vmem_limit,
        ),
        cost_estimate=cost,
    )(joint_h, mgn_h_tilde, W_cat, b_cat)


def xavier_uniform(key, shape, dtype=jnp.float32):
    fan_in, fan_out = shape
    bound = math.sqrt(6.0 / (fan_in + fan_out))
    return jax.random.uniform(key, shape, dtype, minval=-bound, maxval=bound)


if __name__ == "__main__":
    # Module hyper-parameters (input_size * n_dim must equal joint_hidden_size).
    input_size = 8
    n_dim = 4
    joint_hidden_size = input_size * n_dim   # 32
    batch = 2

    key = jax.random.PRNGKey(0)
    k_wz, k_wh, k_h, k_m = jax.random.split(key, 4)

    # Deterministic parameter init mirroring reset_parameters():
    #   W_* : xavier_uniform,  b_* : zeros
    W_z = xavier_uniform(k_wz, (input_size * n_dim, joint_hidden_size))
    W_h = xavier_uniform(k_wh, (joint_hidden_size, joint_hidden_size))
    b_z = jnp.zeros((joint_hidden_size,), jnp.float32)
    b_h = jnp.zeros((joint_hidden_size,), jnp.float32)

    # Fuse / cast ONCE (would be done at parameter init in a real model).
    W_cat, b_cat = fuse_joint_gru_params(W_z, W_h, b_z, b_h)

    # Example inputs (f32, matching the PyTorch module; bf16 also supported).
    joint_h = jax.random.normal(k_h, (batch, joint_hidden_size), jnp.float32)
    mgn_h_tilde = jax.random.normal(k_m, (batch, joint_hidden_size), jnp.float32)

    out = joint_gru_cell(joint_h, mgn_h_tilde, W_cat, b_cat)
    out = jax.block_until_ready(out)
    assert out.shape == (batch, joint_hidden_size)

    # Pure-JAX reference using the same bf16-operand / f32-accumulate matmuls
    # as the kernel (tight check of the kernel logic).
    mgn_bf = mgn_h_tilde.astype(jnp.bfloat16)
    z_ref = jax.nn.sigmoid(
        jnp.dot(mgn_bf, W_z.astype(jnp.bfloat16),
                preferred_element_type=jnp.float32) + b_z)
    ht_ref = jnp.tanh(
        jnp.dot(mgn_bf, W_h.astype(jnp.bfloat16),
                preferred_element_type=jnp.float32) + b_h)
    ref = ht_ref + z_ref * (joint_h - ht_ref)
    assert jnp.allclose(out, ref, atol=1e-4, rtol=1e-4), "mismatch vs bf16 reference"

    # Looser sanity check against the exact f32 module semantics.
    # TODO(synk): if the downstream recurrence is long, keep weights in f32
    # (pass weight_dtype=jnp.float32 to fuse_joint_gru_params) to avoid
    # compounding bf16 weight-rounding error in the state.
    z_f32 = jax.nn.sigmoid(mgn_h_tilde @ W_z + b_z)
    ht_f32 = jnp.tanh(mgn_h_tilde @ W_h + b_h)
    ref_f32 = ht_f32 + z_f32 * (joint_h - ht_f32)
    assert jnp.allclose(out, ref_f32, atol=5e-2, rtol=5e-2), "mismatch vs f32 reference"

    print("KERNEL_OK")
</pallas_src>

<mosaic_0001>
module attributes {stable_mosaic.version = 11 : i64} {
  func.func @joint_gru_kernel(%arg0: i32, %arg1: memref<8x32xf32, #tpu.memory_space<vmem>>, %arg2: memref<8x32xf32, #tpu.memory_space<vmem>>, %arg3: memref<32x64xbf16, #tpu.memory_space<vmem>>, %arg4: memref<1x64xf32, #tpu.memory_space<vmem>>, %arg5: memref<8x32xf32, #tpu.memory_space<vmem>>) attributes {dimension_semantics = [#tpu.dimension_semantics<parallel>], iteration_bounds = array<i64: 1>, scalar_prefetch = 0 : i64, scratch_operands = 0 : i64, tpu.core_type = #tpu.core_type<tc>, window_params = [{transform_indices = @transform_0, window_bounds = array<i64: 8, 32>}, {transform_indices = @transform_1, window_bounds = array<i64: 8, 32>}, {pipeline_mode = #tpu.pipeline_mode<synchronous>, transform_indices = @transform_2, window_bounds = array<i64: 32, 64>}, {pipeline_mode = #tpu.pipeline_mode<synchronous>, transform_indices = @transform_3, window_bounds = array<i64: 1, 64>}, {transform_indices = @transform_4, window_bounds = array<i64: 8, 32>}]} {
    %c0 = arith.constant 0 : index
    %c0_0 = arith.constant 0 : index
    %0 = vector.load %arg2[%c0, %c0_0] : memref<8x32xf32, #tpu.memory_space<vmem>>, vector<8x32xf32>
    %1 = arith.truncf %0 : vector<8x32xf32> to vector<8x32xbf16>
    %c0_1 = arith.constant 0 : index
    %c0_2 = arith.constant 0 : index
    %2 = vector.load %arg3[%c0_1, %c0_2] : memref<32x64xbf16, #tpu.memory_space<vmem>>, vector<32x64xbf16>
    %cst = arith.constant dense<0.000000e+00> : vector<8x64xf32>
    %3 = tpu.matmul %1, %2, %cst {dimension_numbers = #tpu.dot_dimension_numbers<[1], [0], [0], [1], [0, 0, 1, 1], [], []>} : vector<8x32xbf16>, vector<32x64xbf16>, vector<8x64xf32> -> vector<8x64xf32>
    %c0_3 = arith.constant 0 : index
    %c0_4 = arith.constant 0 : index
    %4 = vector.load %arg4[%c0_3, %c0_4] : memref<1x64xf32, #tpu.memory_space<vmem>>, vector<1x64xf32>
    %5 = vector.broadcast %4 : vector<1x64xf32> to vector<8x64xf32>
    %6 = arith.addf %3, %5 : vector<8x64xf32>
    %7 = vector.extract_strided_slice %6 {offsets = [0, 0], sizes = [8, 32], strides = [1, 1]} : vector<8x64xf32> to vector<8x32xf32>
    %8 = arith.negf %7 : vector<8x32xf32>
    %9 = math.exp %8 : vector<8x32xf32>
    %cst_5 = arith.constant 1.000000e+00 : f32
    %10 = vector.broadcast %cst_5 : f32 to vector<8x32xf32>
    %11 = arith.addf %10, %9 : vector<8x32xf32>
    %12 = arith.divf %10, %11 : vector<8x32xf32>
    %13 = vector.extract_strided_slice %6 {offsets = [0, 32], sizes = [8, 32], strides = [1, 1]} : vector<8x64xf32> to vector<8x32xf32>
    %14 = math.tanh %13 : vector<8x32xf32>
    %c0_6 = arith.constant 0 : index
    %c0_7 = arith.constant 0 : index
    %15 = vector.load %arg1[%c0_6, %c0_7] : memref<8x32xf32, #tpu.memory_space<vmem>>, vector<8x32xf32>
    %16 = arith.subf %15, %14 : vector<8x32xf32>
    %17 = arith.mulf %12, %16 : vector<8x32xf32>
    %18 = arith.addf %14, %17 : vector<8x32xf32>
    %c0_8 = arith.constant 0 : index
    %c0_9 = arith.constant 0 : index
    %19 = vector.load %arg5[%c0_8, %c0_9] : memref<8x32xf32, #tpu.memory_space<vmem>>, vector<8x32xf32>
    tpu.vector_store %arg5[%c0_8, %c0_9], %18 {strides = array<i32>} : memref<8x32xf32, #tpu.memory_space<vmem>>, vector<8x32xf32>,
    return
  }
  func.func @transform_0(%arg0: i32) -> (i32, i32) {
    %c0_i32 = arith.constant 0 : i32
    %c0_i32_0 = arith.constant 0 : i32
    return %arg0, %c0_i32 : i32, i32
  }
  func.func @transform_1(%arg0: i32) -> (i32, i32) {
    %c0_i32 = arith.constant 0 : i32
    %c0_i32_0 = arith.constant 0 : i32
    return %arg0, %c0_i32 : i32, i32
  }
  func.func @transform_2(%arg0: i32) -> (i32, i32) {
    %c0_i32 = arith.constant 0 : i32
    %c0_i32_0 = arith.constant 0 : i32
    %c0_i32_1 = arith.constant 0 : i32
    return %c0_i32, %c0_i32_0 : i32, i32
  }
  func.func @transform_3(%arg0: i32) -> (i32, i32) {
    %c0_i32 = arith.constant 0 : i32
    %c0_i32_0 = arith.constant 0 : i32
    %c0_i32_1 = arith.constant 0 : i32
    return %c0_i32, %c0_i32_0 : i32, i32
  }
  func.func @transform_4(%arg0: i32) -> (i32, i32) {
    %c0_i32 = arith.constant 0 : i32
    %c0_i32_0 = arith.constant 0 : i32
    return %arg0, %c0_i32 : i32, i32
  }
}

</mosaic_0001>

<llo_original>
// kernel: tpu_custom_call.1
$region0: #{tpu_custom_call.1}
  #allocation0 [shape = 'u32[]', space=smem, size = 0x4, offset = 0x4, fixed_abs, tag = 'smem constant byte address 0x4 - core index']
  #allocation1 [shape = 'u32[72,128]{1,0:T(1,128)}', space=vmem, size = 0x9000, scoped, tag = 'internal scratch']
  %s0 = inlined_call_operand.hbm [shape: f32[2,32], index: 0, kind: input, shape index: {}]
  %s1 = inlined_call_operand.hbm [shape: f32[2,32], index: 1, kind: input, shape index: {}]
  %s2 = inlined_call_operand.hbm [shape: bf16[32,64], index: 2, kind: input, shape index: {}]
  %s3 = inlined_call_operand.vmem [shape: f32[1,64], index: 3, kind: input, shape index: {}]
  %s4 = inlined_call_operand.hbm [shape: f32[2,32], index: 4, kind: output, shape index: {}]
  %s5 = sld [smem:[#allocation0]]
  $region38: #{tpu_custom_call.1} parent=0
    _
  %s7 = ssub.s32 1, %s5
  %s8 = scalar_select 0, %s7, %s5
  $region1: #{tpu_custom_call.1} parent=0
    #allocation2 [shape = 'u8[4096]{0}', space=vmem, size = 0x1000, scoped, tag = 'input window, operand 0, single buffered']
    #allocation3 [shape = 's32[1]{0}', space=sflag, size = 0x4, scoped, tag = 'scoped memory for tpu_custom_call.1']
    #allocation4 [shape = 's32[1]{0}', space=sflag, size = 0x4, scoped, tag = 'scoped memory for tpu_custom_call.1']
    #allocation5 [shape = 'u8[4096]{0}', space=vmem, size = 0x1000, scoped, tag = 'input window, operand 1, single buffered']
    #allocation6 [shape = 's32[1]{0}', space=sflag, size = 0x4, scoped, tag = 'scoped memory for tpu_custom_call.1']
    #allocation7 [shape = 'u8[8192]{0}', space=vmem, size = 0x2000, scoped, tag = 'input window, operand 2, single buffered']
    #allocation8 [shape = 'u8[4096]{0}', space=vmem, size = 0x1000, scoped, tag = 'output window, operand 0, single buffered']
    %9 = vsyncpa [#allocation3], 0
    %10 = vsyncpa [#allocation6], 0
    %11 = vsyncpa [#allocation4], 0
    // Predicated region
    $region2: #{tpu_custom_call.1} parent=1 // pred_check
      _
    $region3: #{tpu_custom_call.1} parent=1 // pred_check_branch
      %13 = sbr.rel (0) target = $region5
    $region4: #{tpu_custom_call.1} parent=1 // pred_region
      %15 = vsyncadd [#allocation3], 96
      %s16 = sshll.u32 %s0, 4
      %s17 = int_to_ptr.hbm [resolvable:$true] %s16
      %s18 = sshll.u32 [#allocation2], 4
      %s19 = int_to_ptr.vmem [resolvable:$true] %s18
      %24 = dma.hbm_to_vmem [thread:$0]  %s17, 32, %s19, [#allocation3], 32, 32, 2
    $region5: #{tpu_custom_call.1} parent=1 // pred_fallthru
      _
    // Predicated region
    $region6: #{tpu_custom_call.1} parent=1 // pred_check
      _
    $region7: #{tpu_custom_call.1} parent=1 // pred_check_branch
      %26 = sbr.rel (0) target = $region9
    $region8: #{tpu_custom_call.1} parent=1 // pred_region
      %28 = vsyncadd [#allocation6], 96
      %s29 = sshll.u32 %s1, 4
      %s30 = int_to_ptr.hbm [resolvable:$true] %s29
      %s31 = sshll.u32 [#allocation5], 4
      %s32 = int_to_ptr.vmem [resolvable:$true] %s31
      %37 = dma.hbm_to_vmem [thread:$0]  %s30, 32, %s32, [#allocation6], 32, 32, 2
    $region9: #{tpu_custom_call.1} parent=1 // pred_fallthru
      _
    // Predicated region
    $region10: #{tpu_custom_call.1} parent=1 // pred_check
      _
    $region11: #{tpu_custom_call.1} parent=1 // pred_check_branch
      %39 = sbr.rel (0) target = $region13
    $region12: #{tpu_custom_call.1} parent=1 // pred_region
      %41 = vsyncadd [#allocation6], 0
      %s42 = sshll.u32 %s2, 4
      %s43 = int_to_ptr.hbm [resolvable:$true] %s42
      %s44 = sshll.u32 [#allocation7], 4
      %s45 = int_to_ptr.vmem [resolvable:$true] %s44
      %50 = dma.hbm_to_vmem [thread:$0]  %s43, 256, %s45, [#allocation6], 64, 64, 4
    $region13: #{tpu_custom_call.1} parent=1 // pred_fallthru
      _
    // Predicated region
    $region14: #{tpu_custom_call.1} parent=1 // pred_check
      _
    $region15: #{tpu_custom_call.1} parent=1 // pred_check_branch
      %52 = sbr.rel (0) target = $region17
    $region16: #{tpu_custom_call.1} parent=1 // pred_region
      _
    $region17: #{tpu_custom_call.1} parent=1 // pred_fallthru
      _
    // Predicated region
    $region18: #{tpu_custom_call.1} parent=1 // pred_check
      _
    $region19: #{tpu_custom_call.1} parent=1 // pred_check_branch
      %54 = sbr.rel (0) target = $region21
    $region20: #{tpu_custom_call.1} parent=1 // pred_region
      %56 = dma.done [#allocation3], 128
    $region21: #{tpu_custom_call.1} parent=1 // pred_fallthru
      _
    // Predicated region
    $region22: #{tpu_custom_call.1} parent=1 // pred_check
      _
    $region23: #{tpu_custom_call.1} parent=1 // pred_check_branch
      %58 = sbr.rel (0) target = $region25
    $region24: #{tpu_custom_call.1} parent=1 // pred_region
      %60 = dma.done [#allocation6], 128
    $region25: #{tpu_custom_call.1} parent=1 // pred_fallthru
      _
    // Predicated region
    $region26: #{tpu_custom_call.1} parent=1 // pred_check
      _
    $region27: #{tpu_custom_call.1} parent=1 // pred_check_branch
      %62 = sbr.rel (0) target = $region29
    $region28: #{tpu_custom_call.1} parent=1 // pred_region
      %64 = dma.done [#allocation6], 256
    $region29: #{tpu_custom_call.1} parent=1 // pred_fallthru
      _
    %v66 = vld [vmem:[#allocation5] sm:$0xff]
    %v67 = vpack.c.bf16 %v66, %v66
    %v68 = vld [vmem:[#allocation7] sm:$0xf]
    %v69 = vld [vmem:[#allocation7 + $0x4] sm:$0xf]
    %v70 = vld [vmem:[#allocation7 + $0x8] sm:$0xf]
    %v71 = vld [vmem:[#allocation7 + $0xc] sm:$0xf]
    %v72 = vld [vmem:[%s3] sm:$0x1]
    %v74 = vperm.slane %v72, 0
    %v80 = vunpack.c.l.b16 %v68
    %v81 = vunpack.c.l.b16 %v69
    %v82 = vunpack.c.l.b16 %v70
    %v83 = vunpack.c.l.b16 %v71
    %v84 = vpack.c.b16 %v81, %v80
    %v85 = vpack.c.b16 %v83, %v82
    %vm88 = vcmask 261120
    %v90 = vsel %vm88, %v67, 0
    %92 = vmatpush.bf16.msra.mxu0 0
    %93 = vmatpush.bf16.msra.mxu0 0
    %94 = vmatpush.bf16.msra.mxu0 0
    %95 = vmatpush.bf16.msra.mxu0 0
    %96 = vmatpush.bf16.msra.mxu0 0
    %97 = vmatpush.bf16.msra.mxu0 0
    %98 = vmatpush.bf16.msra.mxu0 %v85
    %99 = vmatpush.bf16.msra.mxu0 %v84
    %100 = vmatmul.bf16.gmra.mxu0 %v90
    %v101 = vpop.f32.mrf.mxu0
    %v102 = vadd.f32 %v74, %v101
    %v103 = vpop.f32.mrf.mxu0
    %104 = vdwg.mxu0
    %v105 = vxor.u32 %v102, 2147483648
    %v106 = vmul.f32 %v105, 1.442695
    %v107 = vpow.pop %v106
    %v108 = vadd.f32 %v107, 1.0
    %v109 = vrcp.pop %v108
    %v110 = vmul.f32 %v108, %v109
    %v111 = vsub.f32 1.0, %v110
    %v112 = vmul.f32 %v109, %v111
    %v113 = vadd.f32 %v109, %v112
    %vm114 = vweird.f32 %v108
    %vm115 = vweird.f32 %v109
    %vm116 = vmor %vm114, %vm115
    %v117 = vsel %vm116, %v109, %v113
    %v118 = vand.u32 2147483647, %v108
    %vm119 = vcmp.eq.f32.partialorder %v118, 8.507059e+37
    %v120 = vand.u32 %v108, 2147483648
    %v121 = vor.u32 1.1754944e-38, %v120
    %v122 = vsel %vm119, %v121, %v117
    %v123 = vmul.f32 1.0, %v122
    %v124 = vtanh.pop %v102
    %v125 = vld [vmem:[#allocation2] sm:$0xff]
    %127 = vrot.lane.b32.xlu0 %v124, 96
    %v128 = vpop.permute.xlu0 %127
    %v130 = vsub.f32 %v125, %v128
    %v131 = vmul.f32 %v123, %v130
    %133 = vrot.lane.b32.xlu0 %v131, 32
    %v134 = vpop.permute.xlu0 %133
    %v136 = vadd.f32 %v124, %v134
    %138 = vrot.lane.b32.xlu0 %v136, 96
    %v139 = vpop.permute.xlu0 %138
    %141 = vst.msk [vmem:[#allocation8] sm:$0xff] %vm88, %v139
    // Predicated region
    $region30: #{tpu_custom_call.1} parent=1 // pred_check
      _
    $region31: #{tpu_custom_call.1} parent=1 // pred_check_branch
      %143 = sbr.rel (0) target = $region33
    $region32: #{tpu_custom_call.1} parent=1 // pred_region
      %145 = vsyncadd [#allocation4], 96
      %s146 = sshll.u32 [#allocation8], 4
      %s147 = int_to_ptr.vmem [resolvable:$true] %s146
      %s148 = sshll.u32 %s4, 4
      %s149 = int_to_ptr.hbm [resolvable:$true] %s148
      %154 = dma.vmem_to_hbm [thread:$0]  %s147, 32, %s149, [#allocation4], 32, 32, 2
    $region33: #{tpu_custom_call.1} parent=1 // pred_fallthru
      _
    // Predicated region
    $region34: #{tpu_custom_call.1} parent=1 // pred_check
      _
    $region35: #{tpu_custom_call.1} parent=1 // pred_check_branch
      %156 = sbr.rel (0) target = $region37
    $region36: #{tpu_custom_call.1} parent=1 // pred_region
      %158 = dma.done [#allocation4], 128
    $region37: #{tpu_custom_call.1} parent=1 // pred_fallthru
      _
    %159 = vsyncpa [#allocation3], 1
    %160 = vsyncpa [#allocation6], 1
    %161 = vsyncpa [#allocation4], 1

</llo_original>
